<compile_context>
chip_gen: v6e
topology: v6e:2x2x1
jax: 0.10.0
libtpu: 0.0.40
codegen_flags: <defaults>
</compile_context>

<pallas_src>
import functools

import jax
import jax.numpy as jnp
from jax import lax
from jax.experimental import pallas as pl
from jax.experimental.pallas import tpu as pltpu

LEAK = 0.2
BN_EPS = 1e-5


# ------------------------------ helpers ------------------------------------ #

def _round_up(x, m):
    return ((x + m - 1) // m) * m


def _vmem_limit(nbytes):
    # 2x headroom over the naive double-buffered estimate, clamped to a range
    # that is valid on v5e (16 MiB default scoped) .. v7x (64 MiB physical).
    return int(min(max(2 * nbytes, 8 * 1024 * 1024), 64 * 1024 * 1024))


def _matmul_dims(m, k, cout):
    kp = _round_up(k, 128)          # MXU-native contraction depth
    coutp = _round_up(cout, 128)    # lane-dense output stores
    tm = min(512, _round_up(m, 8))  # M tile (rows); 512 fits all generations
    mp = _round_up(m, tm)
    return mp, kp, coutp, tm


def _pad2d(a, rows, cols):
    r, c = a.shape
    if r == rows and c == cols:
        return a
    return jnp.pad(a, ((0, rows - r), (0, cols - c)))


# ----------------------------- Pallas kernels ------------------------------ #

def _conv_lrelu_kernel(x_ref, w_ref, o_ref):
    # (tm, Kp) @ (Kp, Coutp) -> f32, LeakyReLU(0.2)
    y = jnp.dot(x_ref[...], w_ref[...], preferred_element_type=jnp.float32)
    o_ref[...] = jnp.maximum(y, LEAK * y)


def _conv_stats_kernel(x_ref, w_ref, y_ref, s_ref, ss_ref):
    # Phase 1 of conv+BN: tiled matmul, write Y tile, accumulate per-channel
    # sum and sum-of-squares across the M grid axis (revisited output blocks).
    i = pl.program_id(0)
    y = jnp.dot(x_ref[...], w_ref[...], preferred_element_type=jnp.float32)
    y_ref[...] = y

    @pl.when(i == 0)
    def _():
        s_ref[...] = jnp.zeros_like(s_ref)
        ss_ref[...] = jnp.zeros_like(ss_ref)

    s_ref[...] += jnp.sum(y, axis=0, keepdims=True)
    ss_ref[...] += jnp.sum(y * y, axis=0, keepdims=True)


def _bn_lrelu_kernel(y_ref, a_ref, b_ref, o_ref):
    # Phase 2 of conv+BN: y*a + b (a = gamma*rstd, b = beta - mean*a), LeakyReLU.
    yaff = y_ref[...] * a_ref[...] + b_ref[...]
    o_ref[...] = jnp.maximum(yaff, LEAK * yaff)


def _conv_mean_kernel(x_ref, w_ref, o_ref, *, inv_n):
    # Final 4x4 valid conv (one output pixel / channel) fused with mean over N.
    y = jnp.dot(x_ref[...], w_ref[...], preferred_element_type=jnp.float32)
    o_ref[...] = jnp.sum(y, axis=0, keepdims=True) * inv_n


# ----------------------------- pallas_call wrappers ------------------------ #

def _conv_lrelu_call(xm, wm, tm):
    mp, kp = xm.shape
    coutp = wm.shape[1]
    nmt = mp // tm
    item = xm.dtype.itemsize
    vmem = 2 * (tm * kp + kp * coutp) * item + 2 * tm * coutp * 4
    return pl.pallas_call(
        _conv_lrelu_kernel,
        grid=(nmt,),
        in_specs=[pl.BlockSpec((tm, kp), lambda i: (i, 0)),
                  pl.BlockSpec((kp, coutp), lambda i: (0, 0))],   # resident weights
        out_specs=pl.BlockSpec((tm, coutp), lambda i: (i, 0)),    # lane-dense
        out_shape=jax.ShapeDtypeStruct((mp, coutp), jnp.float32),
        compiler_params=pltpu.CompilerParams(
            dimension_semantics=("parallel",),
            vmem_limit_bytes=_vmem_limit(vmem)),
        cost_estimate=pl.CostEstimate(
            flops=2 * mp * kp * coutp, transcendentals=0,
            bytes_accessed=xm.nbytes + wm.nbytes + mp * coutp * 4),
    )(xm, wm)


def _conv_stats_call(xm, wm, tm):
    mp, kp = xm.shape
    coutp = wm.shape[1]
    nmt = mp // tm
    item = xm.dtype.itemsize
    vmem = 2 * (tm * kp + kp * coutp) * item + 2 * tm * coutp * 4 + 4 * coutp * 4
    return pl.pallas_call(
        _conv_stats_kernel,
        grid=(nmt,),
        in_specs=[pl.BlockSpec((tm, kp), lambda i: (i, 0)),
                  pl.BlockSpec((kp, coutp), lambda i: (0, 0))],
        out_specs=[pl.BlockSpec((tm, coutp), lambda i: (i, 0)),
                   pl.BlockSpec((1, coutp), lambda i: (0, 0)),    # accumulator
                   pl.BlockSpec((1, coutp), lambda i: (0, 0))],   # accumulator
        out_shape=(jax.ShapeDtypeStruct((mp, coutp), jnp.float32),
                   jax.ShapeDtypeStruct((1, coutp), jnp.float32),
                   jax.ShapeDtypeStruct((1, coutp), jnp.float32)),
        compiler_params=pltpu.CompilerParams(
            dimension_semantics=("arbitrary",),   # stats accumulate across M
            vmem_limit_bytes=_vmem_limit(vmem)),
        cost_estimate=pl.CostEstimate(
            flops=2 * mp * kp * coutp, transcendentals=0,
            bytes_accessed=xm.nbytes + wm.nbytes + mp * coutp * 4),
    )(xm, wm)


def _bn_lrelu_call(y, a, b, tm):
    mp, coutp = y.shape
    nmt = mp // tm
    vmem = 4 * tm * coutp * 4 + 4 * coutp * 4
    return pl.pallas_call(
        _bn_lrelu_kernel,
        grid=(nmt,),
        in_specs=[pl.BlockSpec((tm, coutp), lambda i: (i, 0)),
                  pl.BlockSpec((1, coutp), lambda i: (0, 0)),
                  pl.BlockSpec((1, coutp), lambda i: (0, 0))],
        out_specs=pl.BlockSpec((tm, coutp), lambda i: (i, 0)),
        out_shape=jax.ShapeDtypeStruct((mp, coutp), jnp.float32),
        compiler_params=pltpu.CompilerParams(
            dimension_semantics=("parallel",),
            vmem_limit_bytes=_vmem_limit(vmem)),
        cost_estimate=pl.CostEstimate(
            flops=3 * mp * coutp, transcendentals=0,
            bytes_accessed=2 * mp * coutp * 4),
    )(y, a, b)


def _conv_mean_call(xm, wm, n_true):
    mp, kp = xm.shape
    coutp = wm.shape[1]
    item = xm.dtype.itemsize
    vmem = 2 * (mp * kp + kp * coutp) * item + 2 * coutp * 4
    kern = functools.partial(_conv_mean_kernel, inv_n=1.0 / float(n_true))
    return pl.pallas_call(
        kern,
        grid=(1,),
        in_specs=[pl.BlockSpec((mp, kp), lambda i: (0, 0)),
                  pl.BlockSpec((kp, coutp), lambda i: (0, 0))],
        out_specs=pl.BlockSpec((1, coutp), lambda i: (0, 0)),
        out_shape=jax.ShapeDtypeStruct((1, coutp), jnp.float32),
        compiler_params=pltpu.CompilerParams(
            dimension_semantics=("arbitrary",),
            vmem_limit_bytes=_vmem_limit(vmem)),
        cost_estimate=pl.CostEstimate(
            flops=2 * mp * kp * coutp, transcendentals=0,
            bytes_accessed=xm.nbytes + wm.nbytes + coutp * 4),
    )(xm, wm)


# ----------------------------- JAX glue ------------------------------------ #

def _im2col(x_nhwc, kh, kw, stride, pad):
    """NHWC -> (N*OH*OW, KH*KW*Cin) patch matrix (patch order: kh, kw, cin)."""
    x = x_nhwc
    if pad:
        x = jnp.pad(x, ((0, 0), (pad, pad), (pad, pad), (0, 0)))
    n, h, w, c = x.shape
    oh = (h - kh) // stride + 1
    ow = (w - kw) // stride + 1
    cols = []
    for i in range(kh):
        for j in range(kw):
            cols.append(x[:, i:i + stride * oh:stride, j:j + stride * ow:stride, :])
    patches = jnp.stack(cols, axis=3)                    # (n, oh, ow, kh*kw, c)
    patches = patches.reshape(n, oh, ow, kh * kw * c)
    return patches.reshape(n * oh * ow, kh * kw * c), (n, oh, ow)


def _w_matrix(w_oihw):
    """(Cout, Cin, KH, KW) -> (KH*KW*Cin, Cout), matching the im2col ordering."""
    cout, cin, kh, kw = w_oihw.shape
    return jnp.transpose(w_oihw, (2, 3, 1, 0)).reshape(kh * kw * cin, cout)


def init_params(key, isize, nc, ndf, n_extra_layers=0):
    assert isize % 16 == 0, "isize has to be a multiple of 16"
    keys = jax.random.split(key, 32)
    ki = 0
    layers = []

    def conv_w(cout, cin, kh, kw):
        nonlocal ki
        w = 0.05 * jax.random.normal(keys[ki], (cout, cin, kh, kw), jnp.float32)
        ki += 1
        return w

    # initial conv + LeakyReLU
    layers.append(dict(kind="conv_lrelu", w=conv_w(ndf, nc, 4, 4), stride=2, pad=1))
    csize, cndf = isize // 2, ndf

    # extra layers: 3x3 s1 p1 conv + BN + LeakyReLU
    for _ in range(n_extra_layers):
        layers.append(dict(kind="conv_bn_lrelu", w=conv_w(cndf, cndf, 3, 3),
                           stride=1, pad=1,
                           gamma=jnp.ones((1, cndf), jnp.float32),
                           beta=jnp.zeros((1, cndf), jnp.float32)))

    # pyramid: 4x4 s2 p1 conv + BN + LeakyReLU
    while csize > 4:
        layers.append(dict(kind="conv_bn_lrelu", w=conv_w(cndf * 2, cndf, 4, 4),
                           stride=2, pad=1,
                           gamma=jnp.ones((1, cndf * 2), jnp.float32),
                           beta=jnp.zeros((1, cndf * 2), jnp.float32)))
        cndf *= 2
        csize //= 2

    # final: 4x4 s1 p0 conv to 1 channel (mean over batch fused in forward)
    layers.append(dict(kind="conv_mean", w=conv_w(1, cndf, 4, 4), stride=1, pad=0))
    return layers


def dcgan_discriminator_forward(x_nchw, layers, compute_dtype=jnp.bfloat16):
    """Forward pass. compute_dtype is the MXU input dtype (accumulation is f32)."""
    x = jnp.transpose(x_nchw, (0, 2, 3, 1)).astype(jnp.float32)  # NCHW -> NHWC
    for lyr in layers:
        w = lyr["w"]
        cout, _, kh, kw = w.shape
        xm, (n, oh, ow) = _im2col(x, kh, kw, lyr["stride"], lyr["pad"])
        wm = _w_matrix(w)
        m, k = xm.shape
        mp, kp, coutp, tm = _matmul_dims(m, k, cout)
        xm_p = _pad2d(xm, mp, kp).astype(compute_dtype)
        wm_p = _pad2d(wm, kp, coutp).astype(compute_dtype)

        if lyr["kind"] == "conv_lrelu":
            y = _conv_lrelu_call(xm_p, wm_p, tm)
            x = y[:m, :cout].reshape(n, oh, ow, cout)

        elif lyr["kind"] == "conv_bn_lrelu":
            # Phase 1: tiled matmul + per-channel sum / sumsq accumulation.
            y, s, ss = _conv_stats_call(xm_p, wm_p, tm)
            inv_m = 1.0 / m                         # true row count (zero-padded
            mean = s * inv_m                        #  rows contribute 0 to sums)
            var = jnp.maximum(ss * inv_m - mean * mean, 0.0)   # biased variance
            rstd = lax.rsqrt(var + BN_EPS)
            gamma = _pad2d(lyr["gamma"], 1, coutp)
            beta = _pad2d(lyr["beta"], 1, coutp)
            a = gamma * rstd
            b = beta - mean * a
            # Phase 2: tiled normalize + affine + LeakyReLU.
            z = _bn_lrelu_call(y, a, b, tm)
            x = z[:m, :cout].reshape(n, oh, ow, cout)

        else:  # "conv_mean": final conv (OH=OW=1, Cout=1) fused with output.mean(0)
            o = _conv_mean_call(xm_p, wm_p, n)
            return o[0, :1]
    raise AssertionError("final layer missing")


# ----------------------------- reference (pure JAX) ------------------------ #

def reference_forward(x_nchw, layers, compute_dtype=jnp.float32):
    x = jnp.transpose(x_nchw, (0, 2, 3, 1)).astype(jnp.float32)
    for lyr in layers:
        whwio = jnp.transpose(lyr["w"], (2, 3, 1, 0))
        p, s = lyr["pad"], lyr["stride"]
        y = lax.conv_general_dilated(
            x.astype(compute_dtype), whwio.astype(compute_dtype), (s, s),
            ((p, p), (p, p)), dimension_numbers=("NHWC", "HWIO", "NHWC"),
            preferred_element_type=jnp.float32)
        if lyr["kind"] == "conv_lrelu":
            x = jnp.where(y > 0, y, LEAK * y)
        elif lyr["kind"] == "conv_bn_lrelu":
            mean = jnp.mean(y, axis=(0, 1, 2), keepdims=True)
            var = jnp.mean(jnp.square(y - mean), axis=(0, 1, 2), keepdims=True)
            yhat = (y - mean) * lax.rsqrt(var + BN_EPS)
            yaff = (yhat * lyr["gamma"].reshape(1, 1, 1, -1)
                    + lyr["beta"].reshape(1, 1, 1, -1))
            x = jnp.where(yaff > 0, yaff, LEAK * yaff)
        else:
            return jnp.mean(y, axis=0).reshape(1)
    raise AssertionError("final layer missing")


# ----------------------------- main ----------------------------------------- #

if __name__ == "__main__":
    key = jax.random.PRNGKey(0)
    k_w, k_x = jax.random.split(key)

    # small shapes consistent with the module:
    # isize=16 -> initial conv + 1 extra layer + 1 pyramid layer + final conv
    batch, nc, isize, ndf = 2, 4, 16, 8
    layers = init_params(k_w, isize, nc, ndf, n_extra_layers=1)
    x = jax.random.normal(k_x, (batch, nc, isize, isize), jnp.float32)

    # (1) exact-semantics check: f32 MXU inputs vs pure-f32 reference
    out_f32 = jax.block_until_ready(
        dcgan_discriminator_forward(x, layers, compute_dtype=jnp.float32))
    ref_f32 = reference_forward(x, layers, compute_dtype=jnp.float32)
    assert out_f32.shape == (1,)
    assert jnp.allclose(out_f32, ref_f32, rtol=1e-4, atol=1e-4), (out_f32, ref_f32)

    # (2) fast path: bf16 MXU inputs / f32 accumulation vs a reference that
    #     casts its conv inputs to bf16 identically (apples-to-apples).
    out_bf16 = jax.block_until_ready(
        dcgan_discriminator_forward(x, layers, compute_dtype=jnp.bfloat16))
    ref_bf16 = reference_forward(x, layers, compute_dtype=jnp.bfloat16)
    assert out_bf16.shape == (1,)
    assert jnp.allclose(out_bf16, ref_bf16, rtol=1e-3, atol=1e-3), (out_bf16, ref_bf16)

    print("KERNEL_OK")
</pallas_src>

<mosaic_0001>
module attributes {stable_mosaic.version = 11 : i64} {
  func.func @_conv_lrelu_kernel(%arg0: i32, %arg1: memref<128x128xf32, #tpu.memory_space<vmem>>, %arg2: memref<128x128xf32, #tpu.memory_space<vmem>>, %arg3: memref<128x128xf32, #tpu.memory_space<vmem>>) attributes {dimension_semantics = [#tpu.dimension_semantics<parallel>], iteration_bounds = array<i64: 1>, scalar_prefetch = 0 : i64, scratch_operands = 0 : i64, tpu.core_type = #tpu.core_type<tc>, window_params = [{transform_indices = @transform_0, window_bounds = array<i64: 128, 128>}, {pipeline_mode = #tpu.pipeline_mode<synchronous>, transform_indices = @transform_1, window_bounds = array<i64: 128, 128>}, {transform_indices = @transform_2, window_bounds = array<i64: 128, 128>}]} {
    %c0 = arith.constant 0 : index
    %c0_0 = arith.constant 0 : index
    %0 = vector.load %arg1[%c0, %c0_0] : memref<128x128xf32, #tpu.memory_space<vmem>>, vector<128x128xf32>
    %c0_1 = arith.constant 0 : index
    %c0_2 = arith.constant 0 : index
    %1 = vector.load %arg2[%c0_1, %c0_2] : memref<128x128xf32, #tpu.memory_space<vmem>>, vector<128x128xf32>
    %cst = arith.constant dense<0.000000e+00> : vector<128x128xf32>
    %2 = tpu.matmul %0, %1, %cst {dimension_numbers = #tpu.dot_dimension_numbers<[1], [0], [0], [1], [0, 0, 1, 1], [], []>} : vector<128x128xf32>, vector<128x128xf32>, vector<128x128xf32> -> vector<128x128xf32>
    %cst_3 = arith.constant 2.000000e-01 : f32
    %3 = vector.broadcast %cst_3 : f32 to vector<128x128xf32>
    %4 = arith.mulf %3, %2 : vector<128x128xf32>
    %5 = arith.maximumf %2, %4 : vector<128x128xf32>
    %c0_4 = arith.constant 0 : index
    %c0_5 = arith.constant 0 : index
    %6 = vector.load %arg3[%c0_4, %c0_5] : memref<128x128xf32, #tpu.memory_space<vmem>>, vector<128x128xf32>
    tpu.vector_store %arg3[%c0_4, %c0_5], %5 {strides = array<i32>} : memref<128x128xf32, #tpu.memory_space<vmem>>, vector<128x128xf32>,
    return
  }
  func.func @transform_0(%arg0: i32) -> (i32, i32) {
    %c0_i32 = arith.constant 0 : i32
    %c0_i32_0 = arith.constant 0 : i32
    return %arg0, %c0_i32 : i32, i32
  }
  func.func @transform_1(%arg0: i32) -> (i32, i32) {
    %c0_i32 = arith.constant 0 : i32
    %c0_i32_0 = arith.constant 0 : i32
    %c0_i32_1 = arith.constant 0 : i32
    return %c0_i32, %c0_i32_0 : i32, i32
  }
  func.func @transform_2(%arg0: i32) -> (i32, i32) {
    %c0_i32 = arith.constant 0 : i32
    %c0_i32_0 = arith.constant 0 : i32
    return %arg0, %c0_i32 : i32, i32
  }
}

</mosaic_0001>

<llo_original>
// kernel: tpu_custom_call.1
$region0: #{tpu_custom_call.1}
  #allocation0 [shape = 'u32[]', space=smem, size = 0x4, offset = 0x4, fixed_abs, tag = 'smem constant byte address 0x4 - core index']
  #allocation1 [shape = 'u32[144,128]{1,0:T(1,128)}', space=vmem, size = 0x12000, scoped, tag = 'internal scratch']
  %s0 = inlined_call_operand.hbm [shape: f32[128,128], index: 0, kind: input, shape index: {}]
  %s1 = inlined_call_operand.hbm [shape: f32[128,128], index: 1, kind: input, shape index: {}]
  %s2 = inlined_call_operand.hbm [shape: f32[128,128], index: 2, kind: output, shape index: {}]
  %s3 = sld [smem:[#allocation0]]
  $region26: #{tpu_custom_call.1} parent=0
    _
  %s5 = ssub.s32 1, %s3
  %s6 = scalar_select 0, %s5, %s3
  $region1: #{tpu_custom_call.1} parent=0
    #allocation2 [shape = 'u8[65536]{0}', space=vmem, size = 0x10000, scoped, tag = 'input window, operand 0, single buffered']
    #allocation3 [shape = 's32[1]{0}', space=sflag, size = 0x4, scoped, tag = 'scoped memory for tpu_custom_call.1']
    #allocation4 [shape = 's32[1]{0}', space=sflag, size = 0x4, scoped, tag = 'scoped memory for tpu_custom_call.1']
    #allocation5 [shape = 'u8[65536]{0}', space=vmem, size = 0x10000, scoped, tag = 'input window, operand 1, single buffered']
    #allocation6 [shape = 's32[1]{0}', space=sflag, size = 0x4, scoped, tag = 'scoped memory for tpu_custom_call.1']
    #allocation7 [shape = 'u8[65536]{0}', space=vmem, size = 0x10000, scoped, tag = 'output window, operand 0, single buffered']
    %7 = vsyncpa [#allocation3], 0
    %8 = vsyncpa [#allocation6], 0
    %9 = vsyncpa [#allocation4], 0
    // Predicated region
    $region2: #{tpu_custom_call.1} parent=1 // pred_check
      _
    $region3: #{tpu_custom_call.1} parent=1 // pred_check_branch
      %11 = sbr.rel (0) target = $region5
    $region4: #{tpu_custom_call.1} parent=1 // pred_region
      %s13 = ssub.s32 2048, 2048
      %14 = vsyncadd [#allocation3], %s13
      %s15 = sshll.u32 [#allocation2], 4
      %s16 = int_to_ptr.vmem [resolvable:$true] %s15
      %21 = dma.hbm_to_vmem [thread:$0]  %s0, 2048, %s16, [#allocation3], 128, 128, 8
    $region5: #{tpu_custom_call.1} parent=1 // pred_fallthru
      _
    // Predicated region
    $region6: #{tpu_custom_call.1} parent=1 // pred_check
      _
    $region7: #{tpu_custom_call.1} parent=1 // pred_check_branch
      %23 = sbr.rel (0) target = $region9
    $region8: #{tpu_custom_call.1} parent=1 // pred_region
      %s25 = ssub.s32 2048, 2048
      %26 = vsyncadd [#allocation6], %s25
      %s27 = sshll.u32 [#allocation5], 4
      %s28 = int_to_ptr.vmem [resolvable:$true] %s27
      %33 = dma.hbm_to_vmem [thread:$0]  %s1, 2048, %s28, [#allocation6], 128, 128, 8
    $region9: #{tpu_custom_call.1} parent=1 // pred_fallthru
      _
    // Predicated region
    $region10: #{tpu_custom_call.1} parent=1 // pred_check
      _
    $region11: #{tpu_custom_call.1} parent=1 // pred_check_branch
      %35 = sbr.rel (0) target = $region13
    $region12: #{tpu_custom_call.1} parent=1 // pred_region
      %36 = dma.done [#allocation3], 2048
    $region13: #{tpu_custom_call.1} parent=1 // pred_fallthru
      _
    // Predicated region
    $region14: #{tpu_custom_call.1} parent=1 // pred_check
      _
    $region15: #{tpu_custom_call.1} parent=1 // pred_check_branch
      %38 = sbr.rel (0) target = $region17
    $region16: #{tpu_custom_call.1} parent=1 // pred_region
      %39 = dma.done [#allocation6], 2048
    $region17: #{tpu_custom_call.1} parent=1 // pred_fallthru
      _
    %v40 = vld [vmem:[#allocation2] sm:$0xff]
    %v41 = vld [vmem:[#allocation2 + $0x8] sm:$0xff]
    %v42 = vld [vmem:[#allocation2 + $0x10] sm:$0xff]
    %v43 = vld [vmem:[#allocation2 + $0x18] sm:$0xff]
    %v44 = vld [vmem:[#allocation2 + $0x20] sm:$0xff]
    %v45 = vld [vmem:[#allocation2 + $0x28] sm:$0xff]
    %v46 = vld [vmem:[#allocation2 + $0x30] sm:$0xff]
    %v47 = vld [vmem:[#allocation2 + $0x38] sm:$0xff]
    %v48 = vld [vmem:[#allocation2 + $0x40] sm:$0xff]
    %v49 = vld [vmem:[#allocation2 + $0x48] sm:$0xff]
    %v50 = vld [vmem:[#allocation2 + $0x50] sm:$0xff]
    %v51 = vld [vmem:[#allocation2 + $0x58] sm:$0xff]
    %v52 = vld [vmem:[#allocation2 + $0x60] sm:$0xff]
    %v53 = vld [vmem:[#allocation2 + $0x68] sm:$0xff]
    %v54 = vld [vmem:[#allocation2 + $0x70] sm:$0xff]
    %v55 = vld [vmem:[#allocation2 + $0x78] sm:$0xff]
    %v56 = vld [vmem:[#allocation5] sm:$0xff]
    %v57 = vld [vmem:[#allocation5 + $0x8] sm:$0xff]
    %v58 = vld [vmem:[#allocation5 + $0x10] sm:$0xff]
    %v59 = vld [vmem:[#allocation5 + $0x18] sm:$0xff]
    %v60 = vld [vmem:[#allocation5 + $0x20] sm:$0xff]
    %v61 = vld [vmem:[#allocation5 + $0x28] sm:$0xff]
    %v62 = vld [vmem:[#allocation5 + $0x30] sm:$0xff]
    %v63 = vld [vmem:[#allocation5 + $0x38] sm:$0xff]
    %v64 = vld [vmem:[#allocation5 + $0x40] sm:$0xff]
    %v65 = vld [vmem:[#allocation5 + $0x48] sm:$0xff]
    %v66 = vld [vmem:[#allocation5 + $0x50] sm:$0xff]
    %v67 = vld [vmem:[#allocation5 + $0x58] sm:$0xff]
    %v68 = vld [vmem:[#allocation5 + $0x60] sm:$0xff]
    %v69 = vld [vmem:[#allocation5 + $0x68] sm:$0xff]
    %v70 = vld [vmem:[#allocation5 + $0x70] sm:$0xff]
    %v71 = vld [vmem:[#allocation5 + $0x78] sm:$0xff]
    %72 = vmatprep.subr.mxu0 0.0
    %73 = vmatpush1.msra.mxu0 %v71
    %74 = vmatprep.subr.mxu0 0.0
    %75 = vmatpush1.msra.mxu0 %v70
    %76 = vmatprep.subr.mxu0 0.0
    %77 = vmatpush1.msra.mxu0 %v69
    %78 = vmatprep.subr.mxu0 0.0
    %79 = vmatpush1.msra.mxu0 %v68
    %80 = vmatprep.subr.mxu0 0.0
    %81 = vmatpush1.msra.mxu0 %v67
    %82 = vmatprep.subr.mxu0 0.0
    %83 = vmatpush1.msra.mxu0 %v66
    %84 = vmatprep.subr.mxu0 0.0
    %85 = vmatpush1.msra.mxu0 %v65
    %86 = vmatprep.subr.mxu0 0.0
    %87 = vmatpush1.msra.mxu0 %v64
    %88 = vmatprep.subr.mxu0 0.0
    %89 = vmatpush1.msra.mxu0 %v63
    %90 = vmatprep.subr.mxu0 0.0
    %91 = vmatpush1.msra.mxu0 %v62
    %92 = vmatprep.subr.mxu0 0.0
    %93 = vmatpush1.msra.mxu0 %v61
    %94 = vmatprep.subr.mxu0 0.0
    %95 = vmatpush1.msra.mxu0 %v60
    %96 = vmatprep.subr.mxu0 0.0
    %97 = vmatpush1.msra.mxu0 %v59
    %98 = vmatprep.subr.mxu0 0.0
    %99 = vmatpush1.msra.mxu0 %v58
    %100 = vmatprep.subr.mxu0 0.0
    %101 = vmatpush1.msra.mxu0 %v57
    %102 = vmatprep.subr.mxu0 0.0
    %103 = vmatpush1.msra.mxu0 %v56
    %104 = vmatprep.subr.mxu0 0.0
    %105 = vmatpush2.msra.mxu0 0.0
    %106 = vmatprep.subr.mxu0 0.0
    %107 = vmatpush2.msra.mxu0 0.0
    %108 = vmatprep.subr.mxu0 0.0
    %109 = vmatpush2.msra.mxu0 0.0
    %110 = vmatprep.subr.mxu0 0.0
    %111 = vmatpush2.msra.mxu0 0.0
    %112 = vmatprep.subr.mxu0 0.0
    %113 = vmatpush2.msra.mxu0 0.0
    %114 = vmatprep.subr.mxu0 0.0
    %115 = vmatpush2.msra.mxu0 0.0
    %116 = vmatprep.subr.mxu0 0.0
    %117 = vmatpush2.msra.mxu0 0.0
    %118 = vmatprep.subr.mxu0 0.0
    %119 = vmatpush2.msra.mxu0 0.0
    %120 = vmatprep.subr.mxu0 0.0
    %121 = vmatpush2.msra.mxu0 0.0
    %122 = vmatprep.subr.mxu0 0.0
    %123 = vmatpush2.msra.mxu0 0.0
    %124 = vmatprep.subr.mxu0 0.0
    %125 = vmatpush2.msra.mxu0 0.0
    %126 = vmatprep.subr.mxu0 0.0
    %127 = vmatpush2.msra.mxu0 0.0
    %128 = vmatprep.subr.mxu0 0.0
    %129 = vmatpush2.msra.mxu0 0.0
    %130 = vmatprep.subr.mxu0 0.0
    %131 = vmatpush2.msra.mxu0 0.0
    %132 = vmatprep.subr.mxu0 0.0
    %133 = vmatpush2.msra.mxu0 0.0
    %134 = vmatprep.subr.mxu0 0.0
    %135 = vmatpush2.msra.mxu0 0.0
    %136 = vmatprep.mubr.f32.mxu0 0.0
    %137 = vmatmul.mubr.f32.gmra.mxu0 %v40
    %v138 = vpop.f32.mrf.mxu0
    %v139 = vadd.f32 0.0, %v138
    %v140 = vpop.f32.mrf.mxu0
    %141 = vmatprep.mubr.f32.mxu0 0.0
    %142 = vmatmul.mubr.f32.gmra.mxu0 %v41
    %v143 = vpop.f32.mrf.mxu0
    %v144 = vadd.f32 0.0, %v143
    %v145 = vpop.f32.mrf.mxu0
    %146 = vmatprep.mubr.f32.mxu0 0.0
    %147 = vmatmul.mubr.f32.gmra.mxu0 %v42
    %v148 = vpop.f32.mrf.mxu0
    %v149 = vadd.f32 0.0, %v148
    %v150 = vpop.f32.mrf.mxu0
    %151 = vmatprep.mubr.f32.mxu0 0.0
    %152 = vmatmul.mubr.f32.gmra.mxu0 %v43
    %v153 = vpop.f32.mrf.mxu0
    %v154 = vadd.f32 0.0, %v153
    %v155 = vpop.f32.mrf.mxu0
    %156 = vmatprep.mubr.f32.mxu0 0.0
    %157 = vmatmul.mubr.f32.gmra.mxu0 %v44
    %v158 = vpop.f32.mrf.mxu0
    %v159 = vadd.f32 0.0, %v158
    %v160 = vpop.f32.mrf.mxu0
    %161 = vmatprep.mubr.f32.mxu0 0.0
    %162 = vmatmul.mubr.f32.gmra.mxu0 %v45
    %v163 = vpop.f32.mrf.mxu0
    %v164 = vadd.f32 0.0, %v163
    %v165 = vpop.f32.mrf.mxu0
    %166 = vmatprep.mubr.f32.mxu0 0.0
    %167 = vmatmul.mubr.f32.gmra.mxu0 %v46
    %v168 = vpop.f32.mrf.mxu0
    %v169 = vadd.f32 0.0, %v168
    %v170 = vpop.f32.mrf.mxu0
    %171 = vmatprep.mubr.f32.mxu0 0.0
    %172 = vmatmul.mubr.f32.gmra.mxu0 %v47
    %v173 = vpop.f32.mrf.mxu0
    %v174 = vadd.f32 0.0, %v173
    %v175 = vpop.f32.mrf.mxu0
    %176 = vmatprep.mubr.f32.mxu0 0.0
    %177 = vmatmul.mubr.f32.gmra.mxu0 %v48
    %v178 = vpop.f32.mrf.mxu0
    %v179 = vadd.f32 0.0, %v178
    %v180 = vpop.f32.mrf.mxu0
    %181 = vmatprep.mubr.f32.mxu0 0.0
    %182 = vmatmul.mubr.f32.gmra.mxu0 %v49
    %v183 = vpop.f32.mrf.mxu0
    %v184 = vadd.f32 0.0, %v183
    %v185 = vpop.f32.mrf.mxu0
    %186 = vmatprep.mubr.f32.mxu0 0.0
    %187 = vmatmul.mubr.f32.gmra.mxu0 %v50
    %v188 = vpop.f32.mrf.mxu0
    %v189 = vadd.f32 0.0, %v188
    %v190 = vpop.f32.mrf.mxu0
    %191 = vmatprep.mubr.f32.mxu0 0.0
    %192 = vmatmul.mubr.f32.gmra.mxu0 %v51
    %v193 = vpop.f32.mrf.mxu0
    %v194 = vadd.f32 0.0, %v193
    %v195 = vpop.f32.mrf.mxu0
    %196 = vmatprep.mubr.f32.mxu0 0.0
    %197 = vmatmul.mubr.f32.gmra.mxu0 %v52
    %v198 = vpop.f32.mrf.mxu0
    %v199 = vadd.f32 0.0, %v198
    %v200 = vpop.f32.mrf.mxu0
    %201 = vmatprep.mubr.f32.mxu0 0.0
    %202 = vmatmul.mubr.f32.gmra.mxu0 %v53
    %v203 = vpop.f32.mrf.mxu0
    %v204 = vadd.f32 0.0, %v203
    %v205 = vpop.f32.mrf.mxu0
    %206 = vmatprep.mubr.f32.mxu0 0.0
    %207 = vmatmul.mubr.f32.gmra.mxu0 %v54
    %v208 = vpop.f32.mrf.mxu0
    %v209 = vadd.f32 0.0, %v208
    %v210 = vpop.f32.mrf.mxu0
    %211 = vmatprep.mubr.f32.mxu0 0.0
    %212 = vmatmul.mubr.f32.gmra.mxu0 %v55
    %v213 = vpop.f32.mrf.mxu0
    %v214 = vadd.f32 0.0, %v213
    %v215 = vpop.f32.mrf.mxu0
    %216 = vdwg.mxu0
    %v217 = vmul.f32 %v139, 0.2
    %v218 = vmul.f32 %v144, 0.2
    %v219 = vmul.f32 %v149, 0.2
    %v220 = vmul.f32 %v154, 0.2
    %v221 = vmul.f32 %v159, 0.2
    %v222 = vmul.f32 %v164, 0.2
    %v223 = vmul.f32 %v169, 0.2
    %v224 = vmul.f32 %v174, 0.2
    %v225 = vmul.f32 %v179, 0.2
    %v226 = vmul.f32 %v184, 0.2
    %v227 = vmul.f32 %v189, 0.2
    %v228 = vmul.f32 %v194, 0.2
    %v229 = vmul.f32 %v199, 0.2
    %v230 = vmul.f32 %v204, 0.2
    %v231 = vmul.f32 %v209, 0.2
    %v232 = vmul.f32 %v214, 0.2
    %v233 = vmax.f32 %v139, %v217
    %v234 = vmax.f32 %v144, %v218
    %v235 = vmax.f32 %v149, %v219
    %v236 = vmax.f32 %v154, %v220
    %v237 = vmax.f32 %v159, %v221
    %v238 = vmax.f32 %v164, %v222
    %v239 = vmax.f32 %v169, %v223
    %v240 = vmax.f32 %v174, %v224
    %v241 = vmax.f32 %v179, %v225
    %v242 = vmax.f32 %v184, %v226
    %v243 = vmax.f32 %v189, %v227
    %v244 = vmax.f32 %v194, %v228
    %v245 = vmax.f32 %v199, %v229
    %v246 = vmax.f32 %v204, %v230
    %v247 = vmax.f32 %v209, %v231
    %v248 = vmax.f32 %v214, %v232
    %249 = vst [vmem:[#allocation7] sm:$0xff] %v233
    %250 = vst [vmem:[#allocation7 + $0x8] sm:$0xff] %v234
    %251 = vst [vmem:[#allocation7 + $0x10] sm:$0xff] %v235
    %252 = vst [vmem:[#allocation7 + $0x18] sm:$0xff] %v236
    %253 = vst [vmem:[#allocation7 + $0x20] sm:$0xff] %v237
    %254 = vst [vmem:[#allocation7 + $0x28] sm:$0xff] %v238
    %255 = vst [vmem:[#allocation7 + $0x30] sm:$0xff] %v239
    %256 = vst [vmem:[#allocation7 + $0x38] sm:$0xff] %v240
    %257 = vst [vmem:[#allocation7 + $0x40] sm:$0xff] %v241
    %258 = vst [vmem:[#allocation7 + $0x48] sm:$0xff] %v242
    %259 = vst [vmem:[#allocation7 + $0x50] sm:$0xff] %v243
    %260 = vst [vmem:[#allocation7 + $0x58] sm:$0xff] %v244
    %261 = vst [vmem:[#allocation7 + $0x60] sm:$0xff] %v245
    %262 = vst [vmem:[#allocation7 + $0x68] sm:$0xff] %v246
    %263 = vst [vmem:[#allocation7 + $0x70] sm:$0xff] %v247
    %264 = vst [vmem:[#allocation7 + $0x78] sm:$0xff] %v248
    // Predicated region
    $region18: #{tpu_custom_call.1} parent=1 // pred_check
      _
    $region19: #{tpu_custom_call.1} parent=1 // pred_check_branch
      %266 = sbr.rel (0) target = $region21
    $region20: #{tpu_custom_call.1} parent=1 // pred_region
      %s268 = ssub.s32 2048, 2048
      %269 = vsyncadd [#allocation4], %s268
      %s270 = sshll.u32 [#allocation7], 4
      %s271 = int_to_ptr.vmem [resolvable:$true] %s270
      %276 = dma.vmem_to_hbm [thread:$0]  %s271, 2048, %s2, [#allocation4], 128, 128, 8
    $region21: #{tpu_custom_call.1} parent=1 // pred_fallthru
      _
    // Predicated region
    $region22: #{tpu_custom_call.1} parent=1 // pred_check
      _
    $region23: #{tpu_custom_call.1} parent=1 // pred_check_branch
      %278 = sbr.rel (0) target = $region25
    $region24: #{tpu_custom_call.1} parent=1 // pred_region
      %279 = dma.done [#allocation4], 2048
    $region25: #{tpu_custom_call.1} parent=1 // pred_fallthru
      _
    %280 = vsyncpa [#allocation3], 1
    %281 = vsyncpa [#allocation6], 1
    %282 = vsyncpa [#allocation4], 1

</llo_original>
